<compile_context>
chip_gen: v6e
topology: v6e:2x2x1
jax: 0.10.0
libtpu: 0.0.40
codegen_flags: <defaults>
</compile_context>

<pallas_src>
import jax
import jax.numpy as jnp
from jax import lax
from jax.experimental import pallas as pl
from jax.experimental.pallas import tpu as pltpu

HIDDEN = 512   # conv1 out_channels in the reference module
CH = 128       # HIDDEN chunk: (CH, SM) f32 hidden block ~32 vregs -> stays in registers
SM = 256       # lane sub-tile: multiple of 128 -> unmasked stores, full MXU N-tile


def _feature_attention_kernel(x_ref, w1_ref, w2_ref, b2_ref, o_ref):
    # x_ref : (C_aug, tm) f32   input channels + constant-1 bias row, pixels on lanes
    # w1_ref: (n_chunks, CH, C_aug) bf16  conv1 weight with b1 folded in (resident)
    # w2_ref: (n_chunks, 1, CH)     bf16  conv2 weight, chunked to match (resident)
    # b2_ref: (1, 1) f32 scalar in SMEM
    # o_ref : (1, tm)            lane-dense output tile
    n_chunks = w1_ref.shape[0]
    tm = o_ref.shape[-1]
    b2 = b2_ref[0, 0]

    # Static sub-tile loop over the lane axis (tm is a static multiple of SM).
    for s in range(tm // SM):
        x = x_ref[:, s * SM:(s + 1) * SM].astype(jnp.bfloat16)      # (C_aug, SM)

        def hidden_chunk(k, acc):
            # h chunk: MXU, bf16 in / f32 acc; relu + bf16 cast fused on vregs,
            # then consumed immediately by the second matmul (f32 accumulate).
            h = jnp.dot(w1_ref[k], x, preferred_element_type=jnp.float32)  # (CH, SM)
            h = jnp.maximum(h, 0.0).astype(jnp.bfloat16)
            return acc + jnp.dot(w2_ref[k], h, preferred_element_type=jnp.float32)

        att = lax.fori_loop(0, n_chunks, hidden_chunk,
                            jnp.zeros((1, SM), jnp.float32), unroll=True)
        o_ref[:, s * SM:(s + 1) * SM] = (att + b2).astype(o_ref.dtype)


def feature_attention(features, w1, b1, w2, b2, *, tm_target=2048):
    """features: (B, C, H, W) float32.  Returns (B, 1, H, W)."""
    B, C, H, W = features.shape
    HW = H * W

    # Outer spatial tile: multiple of SM (=256), capped so everything stays
    # trivially inside scoped VMEM on v5e/v6e/v7x.  Ragged tail: pad + slice.
    tm_target = max(SM, (tm_target // SM) * SM)
    tm = min(tm_target, pl.cdiv(HW, SM) * SM)
    hw_pad = pl.cdiv(HW, tm) * tm

    x = features.reshape(B, C, HW)                      # free reshape, no transpose
    ones = jnp.ones((B, 1, HW), features.dtype)         # bias channel (b1 folded into W1)
    x = jnp.concatenate([x, ones], axis=1)              # (B, C+1, HW)
    if hw_pad != HW:
        x = jnp.pad(x, ((0, 0), (0, 0), (0, hw_pad - HW)))

    c_aug = C + 1
    n_chunks = HIDDEN // CH
    # W1 augmented with b1 as an extra column, chunked along HIDDEN.
    w1_aug = jnp.concatenate([w1.reshape(HIDDEN, C), b1.reshape(HIDDEN, 1)], axis=1)
    w1_aug = w1_aug.astype(jnp.bfloat16).reshape(n_chunks, CH, c_aug)
    w2_chk = w2.reshape(HIDDEN).astype(jnp.bfloat16).reshape(n_chunks, 1, CH)
    b2_sc = b2.reshape(1, 1).astype(jnp.float32)

    out = pl.pallas_call(
        _feature_attention_kernel,
        out_shape=jax.ShapeDtypeStruct((B, 1, hw_pad), features.dtype),
        grid=(B, hw_pad // tm),
        in_specs=[
            pl.BlockSpec((pl.Squeezed(), c_aug, tm), lambda b, i: (b, 0, i)),   # x tile
            pl.BlockSpec((n_chunks, CH, c_aug), lambda b, i: (0, 0, 0)),        # W1 (resident)
            pl.BlockSpec((n_chunks, 1, CH), lambda b, i: (0, 0, 0)),            # W2 (resident)
            pl.BlockSpec(memory_space=pltpu.MemorySpace.SMEM),                  # b2 scalar
        ],
        out_specs=pl.BlockSpec((pl.Squeezed(), 1, tm), lambda b, i: (b, 0, i)),
        compiler_params=pltpu.CompilerParams(
            dimension_semantics=("parallel", "parallel")),  # shards grid across TCs on v7x
    )(x, w1_aug, w2_chk, b2_sc)

    if hw_pad != HW:
        out = out[:, :, :HW]
    return out.reshape(B, 1, H, W)


def _reference(features, w1, b1, w2, b2):
    """Plain-JAX f32 reference of the PyTorch forward (1x1 convs as einsums)."""
    x = jnp.einsum("bchw,oc->bohw", features, w1.reshape(HIDDEN, -1)) \
        + b1[None, :, None, None]
    x = jnp.maximum(x, 0.0)
    att = jnp.einsum("bchw,oc->bohw", x, w2.reshape(1, HIDDEN)) \
        + b2[None, :, None, None]
    return att


if __name__ == "__main__":
    B, C, H, W = 2, 4, 16, 16   # feature_dim = 4

    key = jax.random.PRNGKey(0)
    k_x, k_w1, k_b1, k_w2, k_b2 = jax.random.split(key, 5)

    features = jax.random.normal(k_x, (B, C, H, W), dtype=jnp.float32)
    # Conv2d weight shapes: conv1 (512, C, 1, 1), conv2 (1, 512, 1, 1)
    w1 = jax.random.normal(k_w1, (HIDDEN, C, 1, 1), dtype=jnp.float32) * 0.1
    b1 = jax.random.normal(k_b1, (HIDDEN,), dtype=jnp.float32) * 0.1
    w2 = jax.random.normal(k_w2, (1, HIDDEN, 1, 1), dtype=jnp.float32) * 0.1
    b2 = jax.random.normal(k_b2, (1,), dtype=jnp.float32) * 0.1

    att = feature_attention(features, w1, b1, w2, b2)
    att = jax.block_until_ready(att)

    ref = _reference(features, w1, b1, w2, b2)
    assert att.shape == (B, 1, H, W), att.shape
    # bf16 MXU inputs with f32 accumulation: compare at a bf16-appropriate tolerance.
    assert jnp.allclose(att, ref, atol=2e-2, rtol=2e-2), "mismatch vs reference"

    print("KERNEL_OK")
</pallas_src>

<mosaic_0001>
module attributes {stable_mosaic.version = 11 : i64} {
  func.func @_feature_attention_kernel(%arg0: i32, %arg1: i32, %arg2: memref<1x5x256xf32, #tpu.memory_space<vmem>>, %arg3: memref<4x128x5xbf16, #tpu.memory_space<vmem>>, %arg4: memref<4x1x128xbf16, #tpu.memory_space<vmem>>, %arg5: memref<1x1xf32, #tpu.memory_space<smem>>, %arg6: memref<1x1x256xf32, #tpu.memory_space<vmem>>) attributes {dimension_semantics = [#tpu.dimension_semantics<parallel>, #tpu.dimension_semantics<parallel>], iteration_bounds = array<i64: 2, 1>, scalar_prefetch = 0 : i64, scratch_operands = 0 : i64, tpu.core_type = #tpu.core_type<tc>, window_params = [{transform_indices = @transform_0, window_bounds = array<i64: 1, 5, 256>}, {pipeline_mode = #tpu.pipeline_mode<synchronous>, transform_indices = @transform_1, window_bounds = array<i64: 4, 128, 5>}, {pipeline_mode = #tpu.pipeline_mode<synchronous>, transform_indices = @transform_2, window_bounds = array<i64: 4, 1, 128>}, {transform_indices = @transform_3, window_bounds = array<i64: 1, 1>}, {transform_indices = @transform_4, window_bounds = array<i64: 1, 1, 256>}]} {
    %c0 = arith.constant 0 : index
    %c0_0 = arith.constant 0 : index
    %0 = memref.load %arg5[%c0, %c0_0] : memref<1x1xf32, #tpu.memory_space<smem>>
    %c0_1 = arith.constant 0 : index
    %c0_2 = arith.constant 0 : index
    %c0_3 = arith.constant 0 : index
    %1 = vector.load %arg2[%c0_1, %c0_2, %c0_3] : memref<1x5x256xf32, #tpu.memory_space<vmem>>, vector<1x5x256xf32>
    %2 = vector.shape_cast %1 : vector<1x5x256xf32> to vector<5x256xf32>
    %3 = arith.truncf %2 : vector<5x256xf32> to vector<5x256xbf16>
    %cst = arith.constant 0.000000e+00 : f32
    %4 = vector.broadcast %cst : f32 to vector<1x256xf32>
    %c0_i32 = arith.constant 0 : i32
    %5 = arith.index_cast %c0_i32 : i32 to index
    %c0_4 = arith.constant 0 : index
    %c0_5 = arith.constant 0 : index
    %6 = vector.load %arg3[%5, %c0_4, %c0_5] : memref<4x128x5xbf16, #tpu.memory_space<vmem>>, vector<1x128x5xbf16>
    %7 = vector.shape_cast %6 : vector<1x128x5xbf16> to vector<128x5xbf16>
    %cst_6 = arith.constant dense<0.000000e+00> : vector<128x256xf32>
    %8 = tpu.matmul %7, %3, %cst_6 {dimension_numbers = #tpu.dot_dimension_numbers<[1], [0], [0], [1], [0, 0, 1, 1], [], []>} : vector<128x5xbf16>, vector<5x256xbf16>, vector<128x256xf32> -> vector<128x256xf32>
    %cst_7 = arith.constant 0.000000e+00 : f32
    %9 = vector.broadcast %cst_7 : f32 to vector<128x256xf32>
    %10 = arith.maximumf %8, %9 : vector<128x256xf32>
    %11 = arith.truncf %10 : vector<128x256xf32> to vector<128x256xbf16>
    %12 = arith.index_cast %c0_i32 : i32 to index
    %c0_8 = arith.constant 0 : index
    %c0_9 = arith.constant 0 : index
    %13 = vector.load %arg4[%12, %c0_8, %c0_9] : memref<4x1x128xbf16, #tpu.memory_space<vmem>>, vector<1x1x128xbf16>
    %14 = vector.shape_cast %13 : vector<1x1x128xbf16> to vector<1x128xbf16>
    %cst_10 = arith.constant dense<0.000000e+00> : vector<1x256xf32>
    %15 = tpu.matmul %14, %11, %cst_10 {dimension_numbers = #tpu.dot_dimension_numbers<[1], [0], [0], [1], [0, 0, 1, 1], [], []>} : vector<1x128xbf16>, vector<128x256xbf16>, vector<1x256xf32> -> vector<1x256xf32>
    %16 = arith.addf %4, %15 : vector<1x256xf32>
    %c1_i32 = arith.constant 1 : i32
    %17 = arith.index_cast %c1_i32 : i32 to index
    %c0_11 = arith.constant 0 : index
    %c0_12 = arith.constant 0 : index
    %18 = vector.load %arg3[%17, %c0_11, %c0_12] : memref<4x128x5xbf16, #tpu.memory_space<vmem>>, vector<1x128x5xbf16>
    %19 = vector.shape_cast %18 : vector<1x128x5xbf16> to vector<128x5xbf16>
    %cst_13 = arith.constant dense<0.000000e+00> : vector<128x256xf32>
    %20 = tpu.matmul %19, %3, %cst_13 {dimension_numbers = #tpu.dot_dimension_numbers<[1], [0], [0], [1], [0, 0, 1, 1], [], []>} : vector<128x5xbf16>, vector<5x256xbf16>, vector<128x256xf32> -> vector<128x256xf32>
    %cst_14 = arith.constant 0.000000e+00 : f32
    %21 = vector.broadcast %cst_14 : f32 to vector<128x256xf32>
    %22 = arith.maximumf %20, %21 : vector<128x256xf32>
    %23 = arith.truncf %22 : vector<128x256xf32> to vector<128x256xbf16>
    %24 = arith.index_cast %c1_i32 : i32 to index
    %c0_15 = arith.constant 0 : index
    %c0_16 = arith.constant 0 : index
    %25 = vector.load %arg4[%24, %c0_15, %c0_16] : memref<4x1x128xbf16, #tpu.memory_space<vmem>>, vector<1x1x128xbf16>
    %26 = vector.shape_cast %25 : vector<1x1x128xbf16> to vector<1x128xbf16>
    %cst_17 = arith.constant dense<0.000000e+00> : vector<1x256xf32>
    %27 = tpu.matmul %26, %23, %cst_17 {dimension_numbers = #tpu.dot_dimension_numbers<[1], [0], [0], [1], [0, 0, 1, 1], [], []>} : vector<1x128xbf16>, vector<128x256xbf16>, vector<1x256xf32> -> vector<1x256xf32>
    %28 = arith.addf %16, %27 : vector<1x256xf32>
    %c2_i32 = arith.constant 2 : i32
    %29 = arith.index_cast %c2_i32 : i32 to index
    %c0_18 = arith.constant 0 : index
    %c0_19 = arith.constant 0 : index
    %30 = vector.load %arg3[%29, %c0_18, %c0_19] : memref<4x128x5xbf16, #tpu.memory_space<vmem>>, vector<1x128x5xbf16>
    %31 = vector.shape_cast %30 : vector<1x128x5xbf16> to vector<128x5xbf16>
    %cst_20 = arith.constant dense<0.000000e+00> : vector<128x256xf32>
    %32 = tpu.matmul %31, %3, %cst_20 {dimension_numbers = #tpu.dot_dimension_numbers<[1], [0], [0], [1], [0, 0, 1, 1], [], []>} : vector<128x5xbf16>, vector<5x256xbf16>, vector<128x256xf32> -> vector<128x256xf32>
    %cst_21 = arith.constant 0.000000e+00 : f32
    %33 = vector.broadcast %cst_21 : f32 to vector<128x256xf32>
    %34 = arith.maximumf %32, %33 : vector<128x256xf32>
    %35 = arith.truncf %34 : vector<128x256xf32> to vector<128x256xbf16>
    %36 = arith.index_cast %c2_i32 : i32 to index
    %c0_22 = arith.constant 0 : index
    %c0_23 = arith.constant 0 : index
    %37 = vector.load %arg4[%36, %c0_22, %c0_23] : memref<4x1x128xbf16, #tpu.memory_space<vmem>>, vector<1x1x128xbf16>
    %38 = vector.shape_cast %37 : vector<1x1x128xbf16> to vector<1x128xbf16>
    %cst_24 = arith.constant dense<0.000000e+00> : vector<1x256xf32>
    %39 = tpu.matmul %38, %35, %cst_24 {dimension_numbers = #tpu.dot_dimension_numbers<[1], [0], [0], [1], [0, 0, 1, 1], [], []>} : vector<1x128xbf16>, vector<128x256xbf16>, vector<1x256xf32> -> vector<1x256xf32>
    %40 = arith.addf %28, %39 : vector<1x256xf32>
    %c3_i32 = arith.constant 3 : i32
    %41 = arith.index_cast %c3_i32 : i32 to index
    %c0_25 = arith.constant 0 : index
    %c0_26 = arith.constant 0 : index
    %42 = vector.load %arg3[%41, %c0_25, %c0_26] : memref<4x128x5xbf16, #tpu.memory_space<vmem>>, vector<1x128x5xbf16>
    %43 = vector.shape_cast %42 : vector<1x128x5xbf16> to vector<128x5xbf16>
    %cst_27 = arith.constant dense<0.000000e+00> : vector<128x256xf32>
    %44 = tpu.matmul %43, %3, %cst_27 {dimension_numbers = #tpu.dot_dimension_numbers<[1], [0], [0], [1], [0, 0, 1, 1], [], []>} : vector<128x5xbf16>, vector<5x256xbf16>, vector<128x256xf32> -> vector<128x256xf32>
    %cst_28 = arith.constant 0.000000e+00 : f32
    %45 = vector.broadcast %cst_28 : f32 to vector<128x256xf32>
    %46 = arith.maximumf %44, %45 : vector<128x256xf32>
    %47 = arith.truncf %46 : vector<128x256xf32> to vector<128x256xbf16>
    %48 = arith.index_cast %c3_i32 : i32 to index
    %c0_29 = arith.constant 0 : index
    %c0_30 = arith.constant 0 : index
    %49 = vector.load %arg4[%48, %c0_29, %c0_30] : memref<4x1x128xbf16, #tpu.memory_space<vmem>>, vector<1x1x128xbf16>
    %50 = vector.shape_cast %49 : vector<1x1x128xbf16> to vector<1x128xbf16>
    %cst_31 = arith.constant dense<0.000000e+00> : vector<1x256xf32>
    %51 = tpu.matmul %50, %47, %cst_31 {dimension_numbers = #tpu.dot_dimension_numbers<[1], [0], [0], [1], [0, 0, 1, 1], [], []>} : vector<1x128xbf16>, vector<128x256xbf16>, vector<1x256xf32> -> vector<1x256xf32>
    %52 = arith.addf %40, %51 : vector<1x256xf32>
    %c4_i32 = arith.constant 4 : i32
    %53 = vector.broadcast %0 : f32 to vector<1x256xf32>
    %54 = arith.addf %52, %53 : vector<1x256xf32>
    %c0_32 = arith.constant 0 : index
    %c0_33 = arith.constant 0 : index
    %c0_34 = arith.constant 0 : index
    %55 = vector.load %arg6[%c0_32, %c0_33, %c0_34] : memref<1x1x256xf32, #tpu.memory_space<vmem>>, vector<1x1x256xf32>
    %56 = vector.shape_cast %55 : vector<1x1x256xf32> to vector<1x256xf32>
    %57 = vector.shape_cast %54 : vector<1x256xf32> to vector<1x1x256xf32>
    tpu.vector_store %arg6[%c0_32, %c0_33, %c0_34], %57 {strides = array<i32>} : memref<1x1x256xf32, #tpu.memory_space<vmem>>, vector<1x1x256xf32>,
    return
  }
  func.func @transform_0(%arg0: i32, %arg1: i32) -> (i32, i32, i32) {
    %c0_i32 = arith.constant 0 : i32
    %c0_i32_0 = arith.constant 0 : i32
    return %arg0, %c0_i32, %arg1 : i32, i32, i32
  }
  func.func @transform_1(%arg0: i32, %arg1: i32) -> (i32, i32, i32) {
    %c0_i32 = arith.constant 0 : i32
    %c0_i32_0 = arith.constant 0 : i32
    %c0_i32_1 = arith.constant 0 : i32
    %c0_i32_2 = arith.constant 0 : i32
    return %c0_i32, %c0_i32_0, %c0_i32_1 : i32, i32, i32
  }
  func.func @transform_2(%arg0: i32, %arg1: i32) -> (i32, i32, i32) {
    %c0_i32 = arith.constant 0 : i32
    %c0_i32_0 = arith.constant 0 : i32
    %c0_i32_1 = arith.constant 0 : i32
    %c0_i32_2 = arith.constant 0 : i32
    return %c0_i32, %c0_i32_0, %c0_i32_1 : i32, i32, i32
  }
  func.func @transform_3(%arg0: i32, %arg1: i32) -> (i32, i32) {
    %c0_i32 = arith.constant 0 : i32
    %c0_i32_0 = arith.constant 0 : i32
    %c0_i32_1 = arith.constant 0 : i32
    return %c0_i32, %c0_i32_0 : i32, i32
  }
  func.func @transform_4(%arg0: i32, %arg1: i32) -> (i32, i32, i32) {
    %c0_i32 = arith.constant 0 : i32
    %c0_i32_0 = arith.constant 0 : i32
    return %arg0, %c0_i32, %arg1 : i32, i32, i32
  }
}

</mosaic_0001>

<llo_original>
// kernel: tpu_custom_call.1
$region0: #{tpu_custom_call.1}
  #allocation0 [shape = 'u32[]', space=smem, size = 0x4, offset = 0x4, fixed_abs, tag = 'smem constant byte address 0x4 - core index']
  #allocation1 [shape = 'u32[144,128]{1,0:T(1,128)}', space=vmem, size = 0x12000, scoped, tag = 'internal scratch']
  #allocation2 [shape = 'f32[1,1]{1,0:T(1,128)S(6)}', space=smem, size = 0x200, scoped, tag = 'scoped memory for tpu_custom_call.1']
  %s0 = inlined_call_operand.vmem [shape: f32[2,5,256], index: 0, kind: input, shape index: {}]
  %s1 = inlined_call_operand.vmem [shape: bf16[4,128,5], index: 1, kind: input, shape index: {}]
  %s2 = inlined_call_operand.vmem [shape: bf16[4,1,128], index: 2, kind: input, shape index: {}]
  %s3 = inlined_call_operand.<no memory space> [shape: f32[1,1], index: 3, kind: input, shape index: {}]
  %s4 = inlined_call_operand.hbm [shape: f32[2,1,256], index: 4, kind: output, shape index: {}]
  %s5 = sld [smem:[#allocation0]]
  $region49: #{tpu_custom_call.1} parent=0
    _
  %s7 = ssub.s32 1, %s5
  %s8 = scalar_select 0, %s7, %s5
  %9 = sst [smem:[#allocation2]] %s3
  $region1: #{tpu_custom_call.1} parent=0
    #allocation3 [shape = 'u8[2048]{0}', space=vmem, size = 0x800, scoped, tag = 'output window, operand 0']
    #allocation4 [shape = 's32[2]{0}', space=sflag, size = 0x8, scoped, tag = 'scoped memory for tpu_custom_call.1']
    %10 = vsyncpa [#allocation4], 0
    %s11 = scalar_lea.sflag [#allocation4], 1
    %12 = vsyncpa %s11, 0
    loop: start=0, step=1, limit=4
    $region2: #{tpu_custom_call.1} parent=1 // loop_pre_header
      _
    $region3: #{tpu_custom_call.1} parent=1 // loop_header
      %s14 = sphi 0, %s18
      %p15 = scmp.ge.s32.totalorder %s14, 4
      %s21 = sphi 0, %s33
      %s22 = sphi 0, %s29
      %s23 = sphi 0, %s21
      %s24 = sphi 0, %s22
      %s25 = sphi 0, %s23
      %s26 = sphi 0, %s24
      %s38 = sphi 0, %s40
      %s41 = sphi 0, %s38
      %s42 = sphi 0, %s41
      %s58 = sphi 0, %s42
      %s62 = sphi 0, %s62
      %s64 = sphi 0, %s62
      %s65 = sphi 0, %s64
      %s79 = sphi 0, %s65
      %s83 = sphi 0, %s83
      %s85 = sphi 0, %s83
      %s86 = sphi 0, %s85
      %s100 = sphi 0, %s86
      %s104 = sphi 0, %s104
      %s106 = sphi 0, %s104
      %s107 = sphi 0, %s106
      %s121 = sphi 0, %s107
      %s129 = sphi 0, %s131
      %s132 = sphi 0, %s129
      %s133 = sphi 0, %s132
      %s149 = sphi 0, %s133
    $region4: #{tpu_custom_call.1} parent=1 // loop_header_branch
      %17 = sbr.rel (%p15) target = $region8
    $region5: #{tpu_custom_call.1} parent=1 // loop_body
      %s19 = ssub.s32 %s14, 1
      %s20 = ssub.s32 %s14, 2
      %s27 = sadd.s32 1, %s22
      %p28 = scmp.ge.s32.totalorder %s27, 1
      %s29 = scalar_select %p28, 0, %s27
      %s30 = sadd.s32 1, %s21
      %s31 = scalar_select %p28, %s30, %s21
      %p32 = scmp.ge.s32.totalorder %s31, 2
      %s33 = scalar_select %p32, 0, %s31
      %s34 = ssub.s32 %s21, %s33
      %s35 = ssub.s32 %s22, %s29
      %s36 = sor.u32 %s34, %s35
      %p37 = scmp.eq.s32.totalorder %s36, 0
      %s39 = sadd.s32 %s38, 1
      %s40 = scalar_select %p37, %s38, %s39
      %p43 = pneg %p37
      %p44 = scmp.eq.s32.totalorder %s14, 1
      %p45 = por %p43, %p44
      %p46 = scmp.ne.s32.totalorder %s38, %s41
      %p47 = scmp.eq.s32.totalorder %s14, 0
      %p48 = por %p46, %p47
      %p49 = scmp.ne.s32.totalorder %s38, %s41
      %p50 = scmp.eq.s32.totalorder %s19, 1
      %p51 = por %p49, %p50
      %p52 = scmp.ne.s32.totalorder %s41, %s42
      %p53 = scmp.eq.s32.totalorder %s19, 0
      %p54 = por %p52, %p53
      %p55 = scmp.ne.s32.totalorder %s41, %s42
      %p56 = scmp.eq.s32.totalorder %s20, 1
      %p57 = por %p55, %p56
      %p59 = scmp.ne.s32.totalorder %s42, %s58
      %p60 = scmp.eq.s32.totalorder %s20, 0
      %p61 = por %p59, %p60
      %s63 = sadd.s32 %s62, 1
      %p66 = scmp.eq.s32.totalorder %s14, 1
      %p67 = scmp.ne.s32.totalorder %s62, %s64
      %p68 = scmp.eq.s32.totalorder %s14, 0
      %p69 = por %p67, %p68
      %p70 = scmp.ne.s32.totalorder %s62, %s64
      %p71 = scmp.eq.s32.totalorder %s19, 1
      %p72 = por %p70, %p71
      %p73 = scmp.ne.s32.totalorder %s64, %s65
      %p74 = scmp.eq.s32.totalorder %s19, 0
      %p75 = por %p73, %p74
      %p76 = scmp.ne.s32.totalorder %s64, %s65
      %p77 = scmp.eq.s32.totalorder %s20, 1
      %p78 = por %p76, %p77
      %p80 = scmp.ne.s32.totalorder %s65, %s79
      %p81 = scmp.eq.s32.totalorder %s20, 0
      %p82 = por %p80, %p81
      %s84 = sadd.s32 %s83, 1
      %p87 = scmp.eq.s32.totalorder %s14, 1
      %p88 = scmp.ne.s32.totalorder %s83, %s85
      %p89 = scmp.eq.s32.totalorder %s14, 0
      %p90 = por %p88, %p89
      %p91 = scmp.ne.s32.totalorder %s83, %s85
      %p92 = scmp.eq.s32.totalorder %s19, 1
      %p93 = por %p91, %p92
      %p94 = scmp.ne.s32.totalorder %s85, %s86
      %p95 = scmp.eq.s32.totalorder %s19, 0
      %p96 = por %p94, %p95
      %p97 = scmp.ne.s32.totalorder %s85, %s86
      %p98 = scmp.eq.s32.totalorder %s20, 1
      %p99 = por %p97, %p98
      %p101 = scmp.ne.s32.totalorder %s86, %s100
      %p102 = scmp.eq.s32.totalorder %s20, 0
      %p103 = por %p101, %p102
      %s105 = sadd.s32 %s104, 1
      %p108 = scmp.eq.s32.totalorder %s14, 1
      %p109 = scmp.ne.s32.totalorder %s104, %s106
      %p110 = scmp.eq.s32.totalorder %s14, 0
      %p111 = por %p109, %p110
      %p112 = scmp.ne.s32.totalorder %s104, %s106
      %p113 = scmp.eq.s32.totalorder %s19, 1
      %p114 = por %p112, %p113
      %p115 = scmp.ne.s32.totalorder %s106, %s107
      %p116 = scmp.eq.s32.totalorder %s19, 0
      %p117 = por %p115, %p116
      %p118 = scmp.ne.s32.totalorder %s106, %s107
      %p119 = scmp.eq.s32.totalorder %s20, 1
      %p120 = por %p118, %p119
      %p122 = scmp.ne.s32.totalorder %s107, %s121
      %p123 = scmp.eq.s32.totalorder %s20, 0
      %p124 = por %p122, %p123
      %s125 = ssub.s32 %s21, %s33
      %s126 = ssub.s32 %s22, %s29
      %s127 = sor.u32 %s125, %s126
      %p128 = scmp.eq.s32.totalorder %s127, 0
      %s130 = sadd.s32 %s129, 1
      %s131 = scalar_select %p128, %s129, %s130
      %p134 = pneg %p128
      %p135 = scmp.eq.s32.totalorder %s14, 1
      %p136 = por %p134, %p135
      %p137 = scmp.ne.s32.totalorder %s129, %s132
      %p138 = scmp.eq.s32.totalorder %s14, 0
      %p139 = por %p137, %p138
      %p140 = scmp.ne.s32.totalorder %s129, %s132
      %p141 = scmp.eq.s32.totalorder %s19, 1
      %p142 = por %p140, %p141
      %p143 = scmp.ne.s32.totalorder %s132, %s133
      %p144 = scmp.eq.s32.totalorder %s19, 0
      %p145 = por %p143, %p144
      %p146 = scmp.ne.s32.totalorder %s132, %s133
      %p147 = scmp.eq.s32.totalorder %s20, 1
      %p148 = por %p146, %p147
      %p150 = scmp.ne.s32.totalorder %s133, %s149
      %p151 = scmp.eq.s32.totalorder %s20, 0
      %p152 = por %p150, %p151
      %p153 = scmp.le.s32.totalorder 1, %s14
      %p154 = scmp.lt.s32.totalorder %s14, 3
      %p155 = pnand %p153, %p154
      %p156 = pneg %p155
      // Predicated region
      $region9: #{tpu_custom_call.1} parent=5 // pred_check
        _
      $region10: #{tpu_custom_call.1} parent=5 // pred_check_branch
        %158 = sbr.rel (%p155) target = $region12
      $region11: #{tpu_custom_call.1} parent=5 // pred_region
        %s159 = ssub.s32 %s14, 1
        // Predicated region
        $region13: #{tpu_custom_call.1} parent=11 // pred_check
          %p160 = pneg %p75
        $region14: #{tpu_custom_call.1} parent=11 // pred_check_branch
          %162 = sbr.rel (%p160) target = $region16
        $region15: #{tpu_custom_call.1} parent=11 // pred_region
          _
        $region16: #{tpu_custom_call.1} parent=11 // pred_fallthru
          _
        // Predicated region
        $region17: #{tpu_custom_call.1} parent=11 // pred_check
          %p163 = pneg %p96
        $region18: #{tpu_custom_call.1} parent=11 // pred_check_branch
          %165 = sbr.rel (%p163) target = $region20
        $region19: #{tpu_custom_call.1} parent=11 // pred_region
          _
        $region20: #{tpu_custom_call.1} parent=11 // pred_fallthru
          _
        // Predicated region
        $region21: #{tpu_custom_call.1} parent=11 // pred_check
          %p166 = pneg %p117
        $region22: #{tpu_custom_call.1} parent=11 // pred_check_branch
          %168 = sbr.rel (%p166) target = $region24
        $region23: #{tpu_custom_call.1} parent=11 // pred_region
          _
        $region24: #{tpu_custom_call.1} parent=11 // pred_fallthru
          _
      $region12: #{tpu_custom_call.1} parent=5 // pred_fallthru
        _
      %p169 = scmp.lt.s32.totalorder %s14, 2
      // Predicated region
      $region25: #{tpu_custom_call.1} parent=5 // pred_check
        %p170 = pneg %p169
      $region26: #{tpu_custom_call.1} parent=5 // pred_check_branch
        %172 = sbr.rel (%p170) target = $region28
      $region27: #{tpu_custom_call.1} parent=5 // pred_region
        // Predicated region
        $region29: #{tpu_custom_call.1} parent=27 // pred_check
          %p173 = pneg %p48
        $region30: #{tpu_custom_call.1} parent=27 // pred_check_branch
          %175 = sbr.rel (%p173) target = $region32
        $region31: #{tpu_custom_call.1} parent=27 // pred_region
          %s176 = smul.u32 2, %s22
          %p177 = scmp.lt.s32.totalorder %s21, 1
          %s178 = scalar_select %p177, %s21, 1
          %p179 = scmp.lt.s32.totalorder %s176, 1
          %s180 = scalar_select %p179, %s176, 1
          %s181 = smul.addr %s178, 2
          %s182 = sadd.s32 %s180, %s181
          %s183 = smul.addr %s182, 8
          %s184 = scalar_lea.vmem %s0, %s183
          %s185 = smul.u32 2, %s22
        $region32: #{tpu_custom_call.1} parent=27 // pred_fallthru
          _
      $region28: #{tpu_custom_call.1} parent=5 // pred_fallthru
        _
      %p186 = scmp.le.s32.totalorder 1, %s14
      %p187 = scmp.lt.s32.totalorder %s14, 3
      %p188 = pnand %p186, %p187
      %p189 = pneg %p188
      // Predicated region
      $region33: #{tpu_custom_call.1} parent=5 // pred_check
        _
      $region34: #{tpu_custom_call.1} parent=5 // pred_check_branch
        %191 = sbr.rel (%p188) target = $region36
      $region35: #{tpu_custom_call.1} parent=5 // pred_region
        %s192 = ssub.s32 %s14, 1
        %s193 = smul.u32 2, %s24
        %p194 = scmp.lt.s32.totalorder %s23, 1
        %s195 = scalar_select %p194, %s23, 1
        %p196 = scmp.lt.s32.totalorder %s193, 1
        %s197 = scalar_select %p196, %s193, 1
        %s198 = smul.addr %s195, 2
        %s199 = sadd.s32 %s197, %s198
        %s200 = smul.addr %s199, 8
        %s201 = scalar_lea.vmem %s0, %s200
        %p202 = pneg %p54
        %p203 = pneg %p51
        %p204 = pneg %p75
        %p205 = pneg %p72
        %p206 = pneg %p96
        %p207 = pneg %p93
        %p208 = pneg %p117
        %p209 = pneg %p114
        %p210 = pneg %p145
        %p211 = pneg %p142
        %s212 = sand.u32 %s132, 1
        %s213 = scalar_lea.sflag [#allocation4], %s212
        %s214 = sand.u32 %s132, 1
        %s215 = smul.addr %s214, 2
        %s216 = scalar_lea.vmem [#allocation3], %s215
        %s217 = smul.u32 2, %s24
        %p218 = scmp.lt.s32.totalorder %s23, 1
        %s219 = scalar_select %p218, %s23, 1
        %p220 = scmp.lt.s32.totalorder %s217, 1
        %s221 = scalar_select %p220, %s217, 1
        %s222 = smul.addr %s219, 2
        %s223 = sadd.s32 %s221, %s222
        %s224 = smul.addr %s223, 8
        %s225 = scalar_lea.vmem %s0, %s224
        %s226 = smul.u32 2, %s24
        %s227 = smul.u32 2, %s24
        %s229 = sld [smem:[#allocation2]]
        %v230 = vld [vmem:[%s225] sm:$0x1f]
        %v231 = vld [vmem:[%s225 + $0x8] sm:$0x1f]
        %v232 = vpack.c.bf16 %v230, %v230
        %v233 = vpack.c.bf16 %v231, %v231
        %v234 = vld [vmem:[%s1] sm:$0xf]
        %v235 = vld [vmem:[%s1 + $0x4] sm:$0xf]
        %v236 = vld [vmem:[%s1 + $0x8] sm:$0xf]
        %v237 = vld [vmem:[%s1 + $0xc] sm:$0xf]
        %v238 = vld [vmem:[%s1 + $0x10] sm:$0xf]
        %v239 = vld [vmem:[%s1 + $0x14] sm:$0xf]
        %v240 = vld [vmem:[%s1 + $0x18] sm:$0xf]
        %v241 = vld [vmem:[%s1 + $0x1c] sm:$0xf]
        %v242 = vld [vmem:[%s1 + $0x20] sm:$0xf]
        %v243 = vld [vmem:[%s1 + $0x24] sm:$0xf]
        %v244 = vld [vmem:[%s1 + $0x28] sm:$0xf]
        %v245 = vld [vmem:[%s1 + $0x2c] sm:$0xf]
        %v246 = vld [vmem:[%s1 + $0x30] sm:$0xf]
        %v247 = vld [vmem:[%s1 + $0x34] sm:$0xf]
        %v248 = vld [vmem:[%s1 + $0x38] sm:$0xf]
        %v249 = vld [vmem:[%s1 + $0x3c] sm:$0xf]
        %v266 = vunpack.c.l.b16 %v234
        %v267 = vunpack.c.l.b16 %v235
        %v268 = vunpack.c.l.b16 %v236
        %v269 = vunpack.c.l.b16 %v237
        %v270 = vunpack.c.l.b16 %v238
        %v271 = vunpack.c.l.b16 %v239
        %v272 = vunpack.c.l.b16 %v240
        %v273 = vunpack.c.l.b16 %v241
        %v274 = vunpack.c.l.b16 %v242
        %v275 = vunpack.c.l.b16 %v243
        %v276 = vunpack.c.l.b16 %v244
        %v277 = vunpack.c.l.b16 %v245
        %v278 = vunpack.c.l.b16 %v246
        %v279 = vunpack.c.l.b16 %v247
        %v280 = vunpack.c.l.b16 %v248
        %v281 = vunpack.c.l.b16 %v249
        %v282 = vpack.c.b16 %v267, %v266
        %v283 = vpack.c.b16 %v269, %v268
        %v284 = vpack.c.b16 %v271, %v270
        %v285 = vpack.c.b16 %v273, %v272
        %v286 = vpack.c.b16 %v275, %v274
        %v287 = vpack.c.b16 %v277, %v276
        %v288 = vpack.c.b16 %v279, %v278
        %v289 = vpack.c.b16 %v281, %v280
        %vm290 = vcmask 39936
        %v292 = vsel %vm290, %v282, 0
        %v295 = vsel %vm290, %v283, 0
        %v298 = vsel %vm290, %v284, 0
        %v301 = vsel %vm290, %v285, 0
        %v304 = vsel %vm290, %v286, 0
        %v307 = vsel %vm290, %v287, 0
        %v310 = vsel %vm290, %v288, 0
        %v313 = vsel %vm290, %v289, 0
        %vm315 = vcmask 1041408
        %vm316 = vcmask 1042432
        %v317 = vsel %vm315, 4294967295, 65535
        %v318 = vsel %vm316, %v317, 0
        %v320 = vand.u32 %v232, %v318
        %v323 = vand.u32 %v233, %v318
        %325 = vmatprep.subr.bf16.mxu0 0
        %326 = vmatpush1.bf16.msra.mxu0 0
        %327 = vmatprep.subr.bf16.mxu0 0
        %328 = vmatpush1.bf16.msra.mxu0 0
        %329 = vmatprep.subr.bf16.mxu0 0
        %330 = vmatpush1.bf16.msra.mxu0 0
        %331 = vmatprep.subr.bf16.mxu0 0
        %332 = vmatpush1.bf16.msra.mxu0 0
        %333 = vmatprep.subr.bf16.mxu0 0
        %334 = vmatpush1.bf16.msra.mxu0 0
        %335 = vmatprep.subr.bf16.mxu0 0
        %336 = vmatpush1.bf16.msra.mxu0 0
        %337 = vmatprep.subr.bf16.mxu0 0
        %338 = vmatpush1.bf16.msra.mxu0 0
        %339 = vmatprep.subr.bf16.mxu0 %v323
        %340 = vmatpush1.bf16.msra.mxu0 %v320
        %341 = vmatprep.subr.bf16.mxu0 0
        %342 = vmatpush2.bf16.msra.mxu0 0
        %343 = vmatprep.subr.bf16.mxu0 0
        %344 = vmatpush2.bf16.msra.mxu0 0
        %345 = vmatprep.subr.bf16.mxu0 0
        %346 = vmatpush2.bf16.msra.mxu0 0
        %347 = vmatprep.subr.bf16.mxu0 0
        %348 = vmatpush2.bf16.msra.mxu0 0
        %349 = vmatprep.subr.bf16.mxu0 0
        %350 = vmatpush2.bf16.msra.mxu0 0
        %351 = vmatprep.subr.bf16.mxu0 0
        %352 = vmatpush2.bf16.msra.mxu0 0
        %353 = vmatprep.subr.bf16.mxu0 0
        %354 = vmatpush2.bf16.msra.mxu0 0
        %355 = vmatprep.subr.bf16.mxu0 0
        %356 = vmatpush2.bf16.msra.mxu0 0
        %357 = vmatprep.mubr.bf16.mxu0 0
        %358 = vmatmul.mubr.bf16.gmra.mxu0 %v292
        %v359 = vpop.f32.mrf.mxu0
        %v360 = vadd.f32 0.0, %v359
        %v361 = vpop.f32.mrf.mxu0
        %v362 = vadd.f32 0.0, %v361
        %v363 = vpop.f32.mrf.mxu0
        %v364 = vadd.f32 0.0, %v363
        %v365 = vpop.f32.mrf.mxu0
        %v366 = vadd.f32 0.0, %v365
        %367 = vmatprep.mubr.bf16.mxu0 0
        %368 = vmatmul.mubr.bf16.gmra.mxu0 %v295
        %v369 = vpop.f32.mrf.mxu0
        %v370 = vadd.f32 0.0, %v369
        %v371 = vpop.f32.mrf.mxu0
        %v372 = vadd.f32 0.0, %v371
        %v373 = vpop.f32.mrf.mxu0
        %v374 = vadd.f32 0.0, %v373
        %v375 = vpop.f32.mrf.mxu0
        %v376 = vadd.f32 0.0, %v375
        %377 = vmatprep.mubr.bf16.mxu0 0
        %378 = vmatmul.mubr.bf16.gmra.mxu0 %v298
        %v379 = vpop.f32.mrf.mxu0
        %v380 = vadd.f32 0.0, %v379
        %v381 = vpop.f32.mrf.mxu0
        %v382 = vadd.f32 0.0, %v381
        %v383 = vpop.f32.mrf.mxu0
        %v384 = vadd.f32 0.0, %v383
        %v385 = vpop.f32.mrf.mxu0
        %v386 = vadd.f32 0.0, %v385
        %387 = vmatprep.mubr.bf16.mxu0 0
        %388 = vmatmul.mubr.bf16.gmra.mxu0 %v301
        %v389 = vpop.f32.mrf.mxu0
        %v390 = vadd.f32 0.0, %v389
        %v391 = vpop.f32.mrf.mxu0
        %v392 = vadd.f32 0.0, %v391
        %v393 = vpop.f32.mrf.mxu0
        %v394 = vadd.f32 0.0, %v393
        %v395 = vpop.f32.mrf.mxu0
        %v396 = vadd.f32 0.0, %v395
        %397 = vmatprep.mubr.bf16.mxu0 0
        %398 = vmatmul.mubr.bf16.gmra.mxu0 %v304
        %v399 = vpop.f32.mrf.mxu0
        %v400 = vadd.f32 0.0, %v399
        %v401 = vpop.f32.mrf.mxu0
        %v402 = vadd.f32 0.0, %v401
        %v403 = vpop.f32.mrf.mxu0
        %v404 = vadd.f32 0.0, %v403
        %v405 = vpop.f32.mrf.mxu0
        %v406 = vadd.f32 0.0, %v405
        %407 = vmatprep.mubr.bf16.mxu0 0
        %408 = vmatmul.mubr.bf16.gmra.mxu0 %v307
        %v409 = vpop.f32.mrf.mxu0
        %v410 = vadd.f32 0.0, %v409
        %v411 = vpop.f32.mrf.mxu0
        %v412 = vadd.f32 0.0, %v411
        %v413 = vpop.f32.mrf.mxu0
        %v414 = vadd.f32 0.0, %v413
        %v415 = vpop.f32.mrf.mxu0
        %v416 = vadd.f32 0.0, %v415
        %417 = vmatprep.mubr.bf16.mxu0 0
        %418 = vmatmul.mubr.bf16.gmra.mxu0 %v310
        %v419 = vpop.f32.mrf.mxu0
        %v420 = vadd.f32 0.0, %v419
        %v421 = vpop.f32.mrf.mxu0
        %v422 = vadd.f32 0.0, %v421
        %v423 = vpop.f32.mrf.mxu0
        %v424 = vadd.f32 0.0, %v423
        %v425 = vpop.f32.mrf.mxu0
        %v426 = vadd.f32 0.0, %v425
        %427 = vmatprep.mubr.bf16.mxu0 0
        %428 = vmatmul.mubr.bf16.gmra.mxu0 %v313
        %v429 = vpop.f32.mrf.mxu0
        %v430 = vadd.f32 0.0, %v429
        %v431 = vpop.f32.mrf.mxu0
        %v432 = vadd.f32 0.0, %v431
        %v433 = vpop.f32.mrf.mxu0
        %v434 = vadd.f32 0.0, %v433
        %v435 = vpop.f32.mrf.mxu0
        %v436 = vadd.f32 0.0, %v435
        %437 = vdwg.mxu0
        %v438 = vmax.f32 %v360, 0.0
        %v439 = vmax.f32 %v362, 0.0
        %v440 = vmax.f32 %v364, 0.0
        %v441 = vmax.f32 %v366, 0.0
        %v442 = vmax.f32 %v370, 0.0
        %v443 = vmax.f32 %v372, 0.0
        %v444 = vmax.f32 %v374, 0.0
        %v445 = vmax.f32 %v376, 0.0
        %v446 = vmax.f32 %v380, 0.0
        %v447 = vmax.f32 %v382, 0.0
        %v448 = vmax.f32 %v384, 0.0
        %v449 = vmax.f32 %v386, 0.0
        %v450 = vmax.f32 %v390, 0.0
        %v451 = vmax.f32 %v392, 0.0
        %v452 = vmax.f32 %v394, 0.0
        %v453 = vmax.f32 %v396, 0.0
        %v454 = vmax.f32 %v400, 0.0
        %v455 = vmax.f32 %v402, 0.0
        %v456 = vmax.f32 %v404, 0.0
        %v457 = vmax.f32 %v406, 0.0
        %v458 = vmax.f32 %v410, 0.0
        %v459 = vmax.f32 %v412, 0.0
        %v460 = vmax.f32 %v414, 0.0
        %v461 = vmax.f32 %v416, 0.0
        %v462 = vmax.f32 %v420, 0.0
        %v463 = vmax.f32 %v422, 0.0
        %v464 = vmax.f32 %v424, 0.0
        %v465 = vmax.f32 %v426, 0.0
        %v466 = vmax.f32 %v430, 0.0
        %v467 = vmax.f32 %v432, 0.0
        %v468 = vmax.f32 %v434, 0.0
        %v469 = vmax.f32 %v436, 0.0
        %v470 = vpack.c.bf16 %v440, %v438
        %v471 = vpack.c.bf16 %v441, %v439
        %v472 = vpack.c.bf16 %v444, %v442
        %v473 = vpack.c.bf16 %v445, %v443
        %v474 = vpack.c.bf16 %v448, %v446
        %v475 = vpack.c.bf16 %v449, %v447
        %v476 = vpack.c.bf16 %v452, %v450
        %v477 = vpack.c.bf16 %v453, %v451
        %v478 = vpack.c.bf16 %v456, %v454
        %v479 = vpack.c.bf16 %v457, %v455
        %v480 = vpack.c.bf16 %v460, %v458
        %v481 = vpack.c.bf16 %v461, %v459
        %v482 = vpack.c.bf16 %v464, %v462
        %v483 = vpack.c.bf16 %v465, %v463
        %v484 = vpack.c.bf16 %v468, %v466
        %v485 = vpack.c.bf16 %v469, %v467
        %v486 = vld [vmem:[%s2] sm:$0x1]
        %s487 = scalar_lea.vmem %s1, 64
        %v488 = vld [vmem:[%s487] sm:$0xf]
        %v489 = vld [vmem:[%s487 + $0x4] sm:$0xf]
        %v490 = vld [vmem:[%s487 + $0x8] sm:$0xf]
        %v491 = vld [vmem:[%s487 + $0xc] sm:$0xf]
        %v492 = vld [vmem:[%s487 + $0x10] sm:$0xf]
        %v493 = vld [vmem:[%s487 + $0x14] sm:$0xf]
        %v494 = vld [vmem:[%s487 + $0x18] sm:$0xf]
        %v495 = vld [vmem:[%s487 + $0x1c] sm:$0xf]
        %v496 = vld [vmem:[%s487 + $0x20] sm:$0xf]
        %v497 = vld [vmem:[%s487 + $0x24] sm:$0xf]
        %v498 = vld [vmem:[%s487 + $0x28] sm:$0xf]
        %v499 = vld [vmem:[%s487 + $0x2c] sm:$0xf]
        %v500 = vld [vmem:[%s487 + $0x30] sm:$0xf]
        %v501 = vld [vmem:[%s487 + $0x34] sm:$0xf]
        %v502 = vld [vmem:[%s487 + $0x38] sm:$0xf]
        %v503 = vld [vmem:[%s487 + $0x3c] sm:$0xf]
        %v520 = vunpack.c.l.b16 %v488
        %v521 = vunpack.c.l.b16 %v489
        %v522 = vunpack.c.l.b16 %v490
        %v523 = vunpack.c.l.b16 %v491
        %v524 = vunpack.c.l.b16 %v492
        %v525 = vunpack.c.l.b16 %v493
        %v526 = vunpack.c.l.b16 %v494
        %v527 = vunpack.c.l.b16 %v495
        %v528 = vunpack.c.l.b16 %v496
        %v529 = vunpack.c.l.b16 %v497
        %v530 = vunpack.c.l.b16 %v498
        %v531 = vunpack.c.l.b16 %v499
        %v532 = vunpack.c.l.b16 %v500
        %v533 = vunpack.c.l.b16 %v501
        %v534 = vunpack.c.l.b16 %v502
        %v535 = vunpack.c.l.b16 %v503
        %v536 = vpack.c.b16 %v521, %v520
        %v537 = vpack.c.b16 %v523, %v522
        %v538 = vpack.c.b16 %v525, %v524
        %v539 = vpack.c.b16 %v527, %v526
        %v540 = vpack.c.b16 %v529, %v528
        %v541 = vpack.c.b16 %v531, %v530
        %v542 = vpack.c.b16 %v533, %v532
        %v543 = vpack.c.b16 %v535, %v534
        %v545 = vsel %vm290, %v536, 0
        %v548 = vsel %vm290, %v537, 0
        %v551 = vsel %vm290, %v538, 0
        %v554 = vsel %vm290, %v539, 0
        %v557 = vsel %vm290, %v540, 0
        %v560 = vsel %vm290, %v541, 0
        %v563 = vsel %vm290, %v542, 0
        %v566 = vsel %vm290, %v543, 0
        %568 = vmatprep.subr.bf16.mxu0 0
        %569 = vmatpush1.bf16.msra.mxu0 0
        %570 = vmatprep.subr.bf16.mxu0 0
        %571 = vmatpush1.bf16.msra.mxu0 0
        %572 = vmatprep.subr.bf16.mxu0 0
        %573 = vmatpush1.bf16.msra.mxu0 0
        %574 = vmatprep.subr.bf16.mxu0 0
        %575 = vmatpush1.bf16.msra.mxu0 0
        %576 = vmatprep.subr.bf16.mxu0 0
        %577 = vmatpush1.bf16.msra.mxu0 0
        %578 = vmatprep.subr.bf16.mxu0 0
        %579 = vmatpush1.bf16.msra.mxu0 0
        %580 = vmatprep.subr.bf16.mxu0 0
        %581 = vmatpush1.bf16.msra.mxu0 0
        %582 = vmatprep.subr.bf16.mxu0 %v323
        %583 = vmatpush1.bf16.msra.mxu0 %v320
        %584 = vmatprep.subr.bf16.mxu0 0
        %585 = vmatpush2.bf16.msra.mxu0 0
        %586 = vmatprep.subr.bf16.mxu0 0
        %587 = vmatpush2.bf16.msra.mxu0 0
        %588 = vmatprep.subr.bf16.mxu0 0
        %589 = vmatpush2.bf16.msra.mxu0 0
        %590 = vmatprep.subr.bf16.mxu0 0
        %591 = vmatpush2.bf16.msra.mxu0 0
        %592 = vmatprep.subr.bf16.mxu0 0
        %593 = vmatpush2.bf16.msra.mxu0 0
        %594 = vmatprep.subr.bf16.mxu0 0
        %595 = vmatpush2.bf16.msra.mxu0 0
        %596 = vmatprep.subr.bf16.mxu0 0
        %597 = vmatpush2.bf16.msra.mxu0 0
        %598 = vmatprep.subr.bf16.mxu0 0
        %599 = vmatpush2.bf16.msra.mxu0 0
        %600 = vmatprep.mubr.bf16.mxu0 0
        %601 = vmatmul.mubr.bf16.gmra.mxu0 %v545
        %v602 = vpop.f32.mrf.mxu0
        %v603 = vadd.f32 0.0, %v602
        %v604 = vpop.f32.mrf.mxu0
        %v605 = vadd.f32 0.0, %v604
        %v606 = vpop.f32.mrf.mxu0
        %v607 = vadd.f32 0.0, %v606
        %v608 = vpop.f32.mrf.mxu0
        %v609 = vadd.f32 0.0, %v608
        %610 = vmatprep.mubr.bf16.mxu0 0
        %611 = vmatmul.mubr.bf16.gmra.mxu0 %v548
        %v612 = vpop.f32.mrf.mxu0
        %v613 = vadd.f32 0.0, %v612
        %v614 = vpop.f32.mrf.mxu0
        %v615 = vadd.f32 0.0, %v614
        %v616 = vpop.f32.mrf.mxu0
        %v617 = vadd.f32 0.0, %v616
        %v618 = vpop.f32.mrf.mxu0
        %v619 = vadd.f32 0.0, %v618
        %620 = vmatprep.mubr.bf16.mxu0 0
        %621 = vmatmul.mubr.bf16.gmra.mxu0 %v551
        %v622 = vpop.f32.mrf.mxu0
        %v623 = vadd.f32 0.0, %v622
        %v624 = vpop.f32.mrf.mxu0
        %v625 = vadd.f32 0.0, %v624
        %v626 = vpop.f32.mrf.mxu0
        %v627 = vadd.f32 0.0, %v626
        %v628 = vpop.f32.mrf.mxu0
        %v629 = vadd.f32 0.0, %v628
        %630 = vmatprep.mubr.bf16.mxu0 0
        %631 = vmatmul.mubr.bf16.gmra.mxu0 %v554
        %v632 = vpop.f32.mrf.mxu0
        %v633 = vadd.f32 0.0, %v632
        %v634 = vpop.f32.mrf.mxu0
        %v635 = vadd.f32 0.0, %v634
        %v636 = vpop.f32.mrf.mxu0
        %v637 = vadd.f32 0.0, %v636
        %v638 = vpop.f32.mrf.mxu0
        %v639 = vadd.f32 0.0, %v638
        %640 = vmatprep.mubr.bf16.mxu0 0
        %641 = vmatmul.mubr.bf16.gmra.mxu0 %v557
        %v642 = vpop.f32.mrf.mxu0
        %v643 = vadd.f32 0.0, %v642
        %v644 = vpop.f32.mrf.mxu0
        %v645 = vadd.f32 0.0, %v644
        %v646 = vpop.f32.mrf.mxu0
        %v647 = vadd.f32 0.0, %v646
        %v648 = vpop.f32.mrf.mxu0
        %v649 = vadd.f32 0.0, %v648
        %650 = vmatprep.mubr.bf16.mxu0 0
        %651 = vmatmul.mubr.bf16.gmra.mxu0 %v560
        %v652 = vpop.f32.mrf.mxu0
        %v653 = vadd.f32 0.0, %v652
        %v654 = vpop.f32.mrf.mxu0
        %v655 = vadd.f32 0.0, %v654
        %v656 = vpop.f32.mrf.mxu0
        %v657 = vadd.f32 0.0, %v656
        %v658 = vpop.f32.mrf.mxu0
        %v659 = vadd.f32 0.0, %v658
        %660 = vmatprep.mubr.bf16.mxu0 0
        %661 = vmatmul.mubr.bf16.gmra.mxu0 %v563
        %v662 = vpop.f32.mrf.mxu0
        %v663 = vadd.f32 0.0, %v662
        %v664 = vpop.f32.mrf.mxu0
        %v665 = vadd.f32 0.0, %v664
        %v666 = vpop.f32.mrf.mxu0
        %v667 = vadd.f32 0.0, %v666
        %v668 = vpop.f32.mrf.mxu0
        %v669 = vadd.f32 0.0, %v668
        %670 = vmatprep.mubr.bf16.mxu0 0
        %671 = vmatmul.mubr.bf16.gmra.mxu0 %v566
        %v672 = vpop.f32.mrf.mxu0
        %v673 = vadd.f32 0.0, %v672
        %v674 = vpop.f32.mrf.mxu0
        %v675 = vadd.f32 0.0, %v674
        %v676 = vpop.f32.mrf.mxu0
        %v677 = vadd.f32 0.0, %v676
        %v678 = vpop.f32.mrf.mxu0
        %v679 = vadd.f32 0.0, %v678
        %680 = vdwg.mxu0
        %v681 = vmax.f32 %v603, 0.0
        %v682 = vmax.f32 %v605, 0.0
        %v683 = vmax.f32 %v607, 0.0
        %v684 = vmax.f32 %v609, 0.0
        %v685 = vmax.f32 %v613, 0.0
        %v686 = vmax.f32 %v615, 0.0
        %v687 = vmax.f32 %v617, 0.0
        %v688 = vmax.f32 %v619, 0.0
        %v689 = vmax.f32 %v623, 0.0
        %v690 = vmax.f32 %v625, 0.0
        %v691 = vmax.f32 %v627, 0.0
        %v692 = vmax.f32 %v629, 0.0
        %v693 = vmax.f32 %v633, 0.0
        %v694 = vmax.f32 %v635, 0.0
        %v695 = vmax.f32 %v637, 0.0
        %v696 = vmax.f32 %v639, 0.0
        %v697 = vmax.f32 %v643, 0.0
        %v698 = vmax.f32 %v645, 0.0
        %v699 = vmax.f32 %v647, 0.0
        %v700 = vmax.f32 %v649, 0.0
        %v701 = vmax.f32 %v653, 0.0
        %v702 = vmax.f32 %v655, 0.0
        %v703 = vmax.f32 %v657, 0.0
        %v704 = vmax.f32 %v659, 0.0
        %v705 = vmax.f32 %v663, 0.0
        %v706 = vmax.f32 %v665, 0.0
        %v707 = vmax.f32 %v667, 0.0
        %v708 = vmax.f32 %v669, 0.0
        %v709 = vmax.f32 %v673, 0.0
        %v710 = vmax.f32 %v675, 0.0
        %v711 = vmax.f32 %v677, 0.0
        %v712 = vmax.f32 %v679, 0.0
        %v713 = vpack.c.bf16 %v683, %v681
        %v714 = vpack.c.bf16 %v684, %v682
        %v715 = vpack.c.bf16 %v687, %v685
        %v716 = vpack.c.bf16 %v688, %v686
        %v717 = vpack.c.bf16 %v691, %v689
        %v718 = vpack.c.bf16 %v692, %v690
        %v719 = vpack.c.bf16 %v695, %v693
        %v720 = vpack.c.bf16 %v696, %v694
        %v721 = vpack.c.bf16 %v699, %v697
        %v722 = vpack.c.bf16 %v700, %v698
        %v723 = vpack.c.bf16 %v703, %v701
        %v724 = vpack.c.bf16 %v704, %v702
        %v725 = vpack.c.bf16 %v707, %v705
        %v726 = vpack.c.bf16 %v708, %v706
        %v727 = vpack.c.bf16 %v711, %v709
        %v728 = vpack.c.bf16 %v712, %v710
        %s729 = scalar_lea.vmem %s2, 1
        %v730 = vld [vmem:[%s729] sm:$0x1]
        %731 = vmatprep.subr.bf16.mxu0 %v728
        %732 = vmatpush1.bf16.msra.mxu0 %v727
        %733 = vmatprep.subr.bf16.mxu0 %v726
        %734 = vmatpush1.bf16.msra.mxu0 %v725
        %735 = vmatprep.subr.bf16.mxu0 %v724
        %736 = vmatpush1.bf16.msra.mxu0 %v723
        %737 = vmatprep.subr.bf16.mxu0 %v722
        %738 = vmatpush1.bf16.msra.mxu0 %v721
        %739 = vmatprep.subr.bf16.mxu0 %v720
        %740 = vmatpush1.bf16.msra.mxu0 %v719
        %741 = vmatprep.subr.bf16.mxu0 %v718
        %742 = vmatpush1.bf16.msra.mxu0 %v717
        %743 = vmatprep.subr.bf16.mxu0 %v716
        %744 = vmatpush1.bf16.msra.mxu0 %v715
        %745 = vmatprep.subr.bf16.mxu0 %v714
        %746 = vmatpush1.bf16.msra.mxu0 %v713
        %747 = vmatprep.subr.bf16.mxu0 0
        %748 = vmatpush2.bf16.msra.mxu0 0
        %749 = vmatprep.subr.bf16.mxu0 0
        %750 = vmatpush2.bf16.msra.mxu0 0
        %751 = vmatprep.subr.bf16.mxu0 0
        %752 = vmatpush2.bf16.msra.mxu0 0
        %753 = vmatprep.subr.bf16.mxu0 0
        %754 = vmatpush2.bf16.msra.mxu0 0
        %755 = vmatprep.subr.bf16.mxu0 0
        %756 = vmatpush2.bf16.msra.mxu0 0
        %757 = vmatprep.subr.bf16.mxu0 0
        %758 = vmatpush2.bf16.msra.mxu0 0
        %759 = vmatprep.subr.bf16.mxu0 0
        %760 = vmatpush2.bf16.msra.mxu0 0
        %761 = vmatprep.subr.bf16.mxu0 0
        %762 = vmatpush2.bf16.msra.mxu0 0
        %763 = vmatprep.mubr.bf16.mxu0 0
        %764 = vmatmul.mubr.bf16.gmra.mxu0 %v730
        %v765 = vpop.f32.mrf.mxu0
        %v766 = vadd.f32 0.0, %v765
        %v767 = vpop.f32.mrf.mxu0
        %v768 = vadd.f32 0.0, %v767
        %v769 = vpop.f32.mrf.mxu0
        %v770 = vpop.f32.mrf.mxu0
        %771 = vdwg.mxu0
        %772 = vmatprep.subr.bf16.mxu0 %v485
        %773 = vmatpush1.bf16.msra.mxu0 %v484
        %774 = vmatprep.subr.bf16.mxu0 %v483
        %775 = vmatpush1.bf16.msra.mxu0 %v482
        %776 = vmatprep.subr.bf16.mxu0 %v481
        %777 = vmatpush1.bf16.msra.mxu0 %v480
        %778 = vmatprep.subr.bf16.mxu0 %v479
        %779 = vmatpush1.bf16.msra.mxu0 %v478
        %780 = vmatprep.subr.bf16.mxu0 %v477
        %781 = vmatpush1.bf16.msra.mxu0 %v476
        %782 = vmatprep.subr.bf16.mxu0 %v475
        %783 = vmatpush1.bf16.msra.mxu0 %v474
        %784 = vmatprep.subr.bf16.mxu0 %v473
        %785 = vmatpush1.bf16.msra.mxu0 %v472
        %786 = vmatprep.subr.bf16.mxu0 %v471
        %787 = vmatpush1.bf16.msra.mxu0 %v470
        %788 = vmatprep.subr.bf16.mxu0 0
        %789 = vmatpush2.bf16.msra.mxu0 0
        %790 = vmatprep.subr.bf16.mxu0 0
        %791 = vmatpush2.bf16.msra.mxu0 0
        %792 = vmatprep.subr.bf16.mxu0 0
        %793 = vmatpush2.bf16.msra.mxu0 0
        %794 = vmatprep.subr.bf16.mxu0 0
        %795 = vmatpush2.bf16.msra.mxu0 0
        %796 = vmatprep.subr.bf16.mxu0 0
        %797 = vmatpush2.bf16.msra.mxu0 0
        %798 = vmatprep.subr.bf16.mxu0 0
        %799 = vmatpush2.bf16.msra.mxu0 0
        %800 = vmatprep.subr.bf16.mxu0 0
        %801 = vmatpush2.bf16.msra.mxu0 0
        %802 = vmatprep.subr.bf16.mxu0 0
        %803 = vmatpush2.bf16.msra.mxu0 0
        %804 = vmatprep.mubr.bf16.mxu0 0
        %805 = vmatmul.mubr.bf16.gmra.mxu0 %v486
        %v806 = vpop.f32.mrf.mxu0
        %v807 = vadd.f32 %v766, %v806
        %v808 = vpop.f32.mrf.mxu0
        %v809 = vadd.f32 %v768, %v808
        %v810 = vpop.f32.mrf.mxu0
        %v811 = vpop.f32.mrf.mxu0
        %812 = vdwg.mxu0
        %s813 = scalar_lea.vmem %s1, 128
        %v814 = vld [vmem:[%s813] sm:$0xf]
        %v815 = vld [vmem:[%s813 + $0x4] sm:$0xf]
        %v816 = vld [vmem:[%s813 + $0x8] sm:$0xf]
        %v817 = vld [vmem:[%s813 + $0xc] sm:$0xf]
        %v818 = vld [vmem:[%s813 + $0x10] sm:$0xf]
        %v819 = vld [vmem:[%s813 + $0x14] sm:$0xf]
        %v820 = vld [vmem:[%s813 + $0x18] sm:$0xf]
        %v821 = vld [vmem:[%s813 + $0x1c] sm:$0xf]
        %v822 = vld [vmem:[%s813 + $0x20] sm:$0xf]
        %v823 = vld [vmem:[%s813 + $0x24] sm:$0xf]
        %v824 = vld [vmem:[%s813 + $0x28] sm:$0xf]
        %v825 = vld [vmem:[%s813 + $0x2c] sm:$0xf]
        %v826 = vld [vmem:[%s813 + $0x30] sm:$0xf]
        %v827 = vld [vmem:[%s813 + $0x34] sm:$0xf]
        %v828 = vld [vmem:[%s813 + $0x38] sm:$0xf]
        %v829 = vld [vmem:[%s813 + $0x3c] sm:$0xf]
        %v846 = vunpack.c.l.b16 %v814
        %v847 = vunpack.c.l.b16 %v815
        %v848 = vunpack.c.l.b16 %v816
        %v849 = vunpack.c.l.b16 %v817
        %v850 = vunpack.c.l.b16 %v818
        %v851 = vunpack.c.l.b16 %v819
        %v852 = vunpack.c.l.b16 %v820
        %v853 = vunpack.c.l.b16 %v821
        %v854 = vunpack.c.l.b16 %v822
        %v855 = vunpack.c.l.b16 %v823
        %v856 = vunpack.c.l.b16 %v824
        %v857 = vunpack.c.l.b16 %v825
        %v858 = vunpack.c.l.b16 %v826
        %v859 = vunpack.c.l.b16 %v827
        %v860 = vunpack.c.l.b16 %v828
        %v861 = vunpack.c.l.b16 %v829
        %v862 = vpack.c.b16 %v847, %v846
        %v863 = vpack.c.b16 %v849, %v848
        %v864 = vpack.c.b16 %v851, %v850
        %v865 = vpack.c.b16 %v853, %v852
        %v866 = vpack.c.b16 %v855, %v854
        %v867 = vpack.c.b16 %v857, %v856
        %v868 = vpack.c.b16 %v859, %v858
        %v869 = vpack.c.b16 %v861, %v860
        %v871 = vsel %vm290, %v862, 0
        %v874 = vsel %vm290, %v863, 0
        %v877 = vsel %vm290, %v864, 0
        %v880 = vsel %vm290, %v865, 0
        %v883 = vsel %vm290, %v866, 0
        %v886 = vsel %vm290, %v867, 0
        %v889 = vsel %vm290, %v868, 0
        %v892 = vsel %vm290, %v869, 0
        %894 = vmatprep.subr.bf16.mxu0 0
        %895 = vmatpush1.bf16.msra.mxu0 0
        %896 = vmatprep.subr.bf16.mxu0 0
        %897 = vmatpush1.bf16.msra.mxu0 0
        %898 = vmatprep.subr.bf16.mxu0 0
        %899 = vmatpush1.bf16.msra.mxu0 0
        %900 = vmatprep.subr.bf16.mxu0 0
        %901 = vmatpush1.bf16.msra.mxu0 0
        %902 = vmatprep.subr.bf16.mxu0 0
        %903 = vmatpush1.bf16.msra.mxu0 0
        %904 = vmatprep.subr.bf16.mxu0 0
        %905 = vmatpush1.bf16.msra.mxu0 0
        %906 = vmatprep.subr.bf16.mxu0 0
        %907 = vmatpush1.bf16.msra.mxu0 0
        %908 = vmatprep.subr.bf16.mxu0 %v323
        %909 = vmatpush1.bf16.msra.mxu0 %v320
        %910 = vmatprep.subr.bf16.mxu0 0
        %911 = vmatpush2.bf16.msra.mxu0 0
        %912 = vmatprep.subr.bf16.mxu0 0
        %913 = vmatpush2.bf16.msra.mxu0 0
        %914 = vmatprep.subr.bf16.mxu0 0
        %915 = vmatpush2.bf16.msra.mxu0 0
        %916 = vmatprep.subr.bf16.mxu0 0
        %917 = vmatpush2.bf16.msra.mxu0 0
        %918 = vmatprep.subr.bf16.mxu0 0
        %919 = vmatpush2.bf16.msra.mxu0 0
        %920 = vmatprep.subr.bf16.mxu0 0
        %921 = vmatpush2.bf16.msra.mxu0 0
        %922 = vmatprep.subr.bf16.mxu0 0
        %923 = vmatpush2.bf16.msra.mxu0 0
        %924 = vmatprep.subr.bf16.mxu0 0
        %925 = vmatpush2.bf16.msra.mxu0 0
        %926 = vmatprep.mubr.bf16.mxu0 0
        %927 = vmatmul.mubr.bf16.gmra.mxu0 %v871
        %v928 = vpop.f32.mrf.mxu0
        %v929 = vadd.f32 0.0, %v928
        %v930 = vpop.f32.mrf.mxu0
        %v931 = vadd.f32 0.0, %v930
        %v932 = vpop.f32.mrf.mxu0
        %v933 = vadd.f32 0.0, %v932
        %v934 = vpop.f32.mrf.mxu0
        %v935 = vadd.f32 0.0, %v934
        %936 = vmatprep.mubr.bf16.mxu0 0
        %937 = vmatmul.mubr.bf16.gmra.mxu0 %v874
        %v938 = vpop.f32.mrf.mxu0
        %v939 = vadd.f32 0.0, %v938
        %v940 = vpop.f32.mrf.mxu0
        %v941 = vadd.f32 0.0, %v940
        %v942 = vpop.f32.mrf.mxu0
        %v943 = vadd.f32 0.0, %v942
        %v944 = vpop.f32.mrf.mxu0
        %v945 = vadd.f32 0.0, %v944
        %946 = vmatprep.mubr.bf16.mxu0 0
        %947 = vmatmul.mubr.bf16.gmra.mxu0 %v877
        %v948 = vpop.f32.mrf.mxu0
        %v949 = vadd.f32 0.0, %v948
        %v950 = vpop.f32.mrf.mxu0
        %v951 = vadd.f32 0.0, %v950
        %v952 = vpop.f32.mrf.mxu0
        %v953 = vadd.f32 0.0, %v952
        %v954 = vpop.f32.mrf.mxu0
        %v955 = vadd.f32 0.0, %v954
        %956 = vmatprep.mubr.bf16.mxu0 0
        %957 = vmatmul.mubr.bf16.gmra.mxu0 %v880
        %v958 = vpop.f32.mrf.mxu0
        %v959 = vadd.f32 0.0, %v958
        %v960 = vpop.f32.mrf.mxu0
        %v961 = vadd.f32 0.0, %v960
        %v962 = vpop.f32.mrf.mxu0
        %v963 = vadd.f32 0.0, %v962
        %v964 = vpop.f32.mrf.mxu0
        %v965 = vadd.f32 0.0, %v964
        %966 = vmatprep.mubr.bf16.mxu0 0
        %967 = vmatmul.mubr.bf16.gmra.mxu0 %v883
        %v968 = vpop.f32.mrf.mxu0
        %v969 = vadd.f32 0.0, %v968
        %v970 = vpop.f32.mrf.mxu0
        %v971 = vadd.f32 0.0, %v970
        %v972 = vpop.f32.mrf.mxu0
        %v973 = vadd.f32 0.0, %v972
        %v974 = vpop.f32.mrf.mxu0
        %v975 = vadd.f32 0.0, %v974
        %976 = vmatprep.mubr.bf16.mxu0 0
        %977 = vmatmul.mubr.bf16.gmra.mxu0 %v886
        %v978 = vpop.f32.mrf.mxu0
        %v979 = vadd.f32 0.0, %v978
        %v980 = vpop.f32.mrf.mxu0
        %v981 = vadd.f32 0.0, %v980
        %v982 = vpop.f32.mrf.mxu0
        %v983 = vadd.f32 0.0, %v982
        %v984 = vpop.f32.mrf.mxu0
        %v985 = vadd.f32 0.0, %v984
        %986 = vmatprep.mubr.bf16.mxu0 0
        %987 = vmatmul.mubr.bf16.gmra.mxu0 %v889
        %v988 = vpop.f32.mrf.mxu0
        %v989 = vadd.f32 0.0, %v988
        %v990 = vpop.f32.mrf.mxu0
        %v991 = vadd.f32 0.0, %v990
        %v992 = vpop.f32.mrf.mxu0
        %v993 = vadd.f32 0.0, %v992
        %v994 = vpop.f32.mrf.mxu0
        %v995 = vadd.f32 0.0, %v994
        %996 = vmatprep.mubr.bf16.mxu0 0
        %997 = vmatmul.mubr.bf16.gmra.mxu0 %v892
        %v998 = vpop.f32.mrf.mxu0
        %v999 = vadd.f32 0.0, %v998
        %v1000 = vpop.f32.mrf.mxu0
        %v1001 = vadd.f32 0.0, %v1000
        %v1002 = vpop.f32.mrf.mxu0
        %v1003 = vadd.f32 0.0, %v1002
        %v1004 = vpop.f32.mrf.mxu0
        %v1005 = vadd.f32 0.0, %v1004
        %1006 = vdwg.mxu0
        %v1007 = vmax.f32 %v929, 0.0
        %v1008 = vmax.f32 %v931, 0.0
        %v1009 = vmax.f32 %v933, 0.0
        %v1010 = vmax.f32 %v935, 0.0
        %v1011 = vmax.f32 %v939, 0.0
        %v1012 = vmax.f32 %v941, 0.0
        %v1013 = vmax.f32 %v943, 0.0
        %v1014 = vmax.f32 %v945, 0.0
        %v1015 = vmax.f32 %v949, 0.0
        %v1016 = vmax.f32 %v951, 0.0
        %v1017 = vmax.f32 %v953, 0.0
        %v1018 = vmax.f32 %v955, 0.0
        %v1019 = vmax.f32 %v959, 0.0
        %v1020 = vmax.f32 %v961, 0.0
        %v1021 = vmax.f32 %v963, 0.0
        %v1022 = vmax.f32 %v965, 0.0
        %v1023 = vmax.f32 %v969, 0.0
        %v1024 = vmax.f32 %v971, 0.0
        %v1025 = vmax.f32 %v973, 0.0
        %v1026 = vmax.f32 %v975, 0.0
        %v1027 = vmax.f32 %v979, 0.0
        %v1028 = vmax.f32 %v981, 0.0
        %v1029 = vmax.f32 %v983, 0.0
        %v1030 = vmax.f32 %v985, 0.0
        %v1031 = vmax.f32 %v989, 0.0
        %v1032 = vmax.f32 %v991, 0.0
        %v1033 = vmax.f32 %v993, 0.0
        %v1034 = vmax.f32 %v995, 0.0
        %v1035 = vmax.f32 %v999, 0.0
        %v1036 = vmax.f32 %v1001, 0.0
        %v1037 = vmax.f32 %v1003, 0.0
        %v1038 = vmax.f32 %v1005, 0.0
        %v1039 = vpack.c.bf16 %v1009, %v1007
        %v1040 = vpack.c.bf16 %v1010, %v1008
        %v1041 = vpack.c.bf16 %v1013, %v1011
        %v1042 = vpack.c.bf16 %v1014, %v1012
        %v1043 = vpack.c.bf16 %v1017, %v1015
        %v1044 = vpack.c.bf16 %v1018, %v1016
        %v1045 = vpack.c.bf16 %v1021, %v1019
        %v1046 = vpack.c.bf16 %v1022, %v1020
        %v1047 = vpack.c.bf16 %v1025, %v1023
        %v1048 = vpack.c.bf16 %v1026, %v1024
        %v1049 = vpack.c.bf16 %v1029, %v1027
        %v1050 = vpack.c.bf16 %v1030, %v1028
        %v1051 = vpack.c.bf16 %v1033, %v1031
        %v1052 = vpack.c.bf16 %v1034, %v1032
        %v1053 = vpack.c.bf16 %v1037, %v1035
        %v1054 = vpack.c.bf16 %v1038, %v1036
        %s1055 = scalar_lea.vmem %s2, 2
        %v1056 = vld [vmem:[%s1055] sm:$0x1]
        %1057 = vmatprep.subr.bf16.mxu0 %v1054
        %1058 = vmatpush1.bf16.msra.mxu0 %v1053
        %1059 = vmatprep.subr.bf16.mxu0 %v1052
        %1060 = vmatpush1.bf16.msra.mxu0 %v1051
        %1061 = vmatprep.subr.bf16.mxu0 %v1050
        %1062 = vmatpush1.bf16.msra.mxu0 %v1049
        %1063 = vmatprep.subr.bf16.mxu0 %v1048
        %1064 = vmatpush1.bf16.msra.mxu0 %v1047
        %1065 = vmatprep.subr.bf16.mxu0 %v1046
        %1066 = vmatpush1.bf16.msra.mxu0 %v1045
        %1067 = vmatprep.subr.bf16.mxu0 %v1044
        %1068 = vmatpush1.bf16.msra.mxu0 %v1043
        %1069 = vmatprep.subr.bf16.mxu0 %v1042
        %1070 = vmatpush1.bf16.msra.mxu0 %v1041
        %1071 = vmatprep.subr.bf16.mxu0 %v1040
        %1072 = vmatpush1.bf16.msra.mxu0 %v1039
        %1073 = vmatprep.subr.bf16.mxu0 0
        %1074 = vmatpush2.bf16.msra.mxu0 0
        %1075 = vmatprep.subr.bf16.mxu0 0
        %1076 = vmatpush2.bf16.msra.mxu0 0
        %1077 = vmatprep.subr.bf16.mxu0 0
        %1078 = vmatpush2.bf16.msra.mxu0 0
        %1079 = vmatprep.subr.bf16.mxu0 0
        %1080 = vmatpush2.bf16.msra.mxu0 0
        %1081 = vmatprep.subr.bf16.mxu0 0
        %1082 = vmatpush2.bf16.msra.mxu0 0
        %1083 = vmatprep.subr.bf16.mxu0 0
        %1084 = vmatpush2.bf16.msra.mxu0 0
        %1085 = vmatprep.subr.bf16.mxu0 0
        %1086 = vmatpush2.bf16.msra.mxu0 0
        %1087 = vmatprep.subr.bf16.mxu0 0
        %1088 = vmatpush2.bf16.msra.mxu0 0
        %1089 = vmatprep.mubr.bf16.mxu0 0
        %1090 = vmatmul.mubr.bf16.gmra.mxu0 %v1056
        %v1091 = vpop.f32.mrf.mxu0
        %v1092 = vadd.f32 0.0, %v1091
        %v1093 = vpop.f32.mrf.mxu0
        %v1094 = vadd.f32 0.0, %v1093
        %v1095 = vpop.f32.mrf.mxu0
        %v1096 = vpop.f32.mrf.mxu0
        %1097 = vdwg.mxu0
        %v1098 = vadd.f32 %v807, %v1092
        %v1099 = vadd.f32 %v809, %v1094
        %s1100 = scalar_lea.vmem %s1, 192
        %v1101 = vld [vmem:[%s1100] sm:$0xf]
        %v1102 = vld [vmem:[%s1100 + $0x4] sm:$0xf]
        %v1103 = vld [vmem:[%s1100 + $0x8] sm:$0xf]
        %v1104 = vld [vmem:[%s1100 + $0xc] sm:$0xf]
        %v1105 = vld [vmem:[%s1100 + $0x10] sm:$0xf]
        %v1106 = vld [vmem:[%s1100 + $0x14] sm:$0xf]
        %v1107 = vld [vmem:[%s1100 + $0x18] sm:$0xf]
        %v1108 = vld [vmem:[%s1100 + $0x1c] sm:$0xf]
        %v1109 = vld [vmem:[%s1100 + $0x20] sm:$0xf]
        %v1110 = vld [vmem:[%s1100 + $0x24] sm:$0xf]
        %v1111 = vld [vmem:[%s1100 + $0x28] sm:$0xf]
        %v1112 = vld [vmem:[%s1100 + $0x2c] sm:$0xf]
        %v1113 = vld [vmem:[%s1100 + $0x30] sm:$0xf]
        %v1114 = vld [vmem:[%s1100 + $0x34] sm:$0xf]
        %v1115 = vld [vmem:[%s1100 + $0x38] sm:$0xf]
        %v1116 = vld [vmem:[%s1100 + $0x3c] sm:$0xf]
        %v1133 = vunpack.c.l.b16 %v1101
        %v1134 = vunpack.c.l.b16 %v1102
        %v1135 = vunpack.c.l.b16 %v1103
        %v1136 = vunpack.c.l.b16 %v1104
        %v1137 = vunpack.c.l.b16 %v1105
        %v1138 = vunpack.c.l.b16 %v1106
        %v1139 = vunpack.c.l.b16 %v1107
        %v1140 = vunpack.c.l.b16 %v1108
        %v1141 = vunpack.c.l.b16 %v1109
        %v1142 = vunpack.c.l.b16 %v1110
        %v1143 = vunpack.c.l.b16 %v1111
        %v1144 = vunpack.c.l.b16 %v1112
        %v1145 = vunpack.c.l.b16 %v1113
        %v1146 = vunpack.c.l.b16 %v1114
        %v1147 = vunpack.c.l.b16 %v1115
        %v1148 = vunpack.c.l.b16 %v1116
        %v1149 = vpack.c.b16 %v1134, %v1133
        %v1150 = vpack.c.b16 %v1136, %v1135
        %v1151 = vpack.c.b16 %v1138, %v1137
        %v1152 = vpack.c.b16 %v1140, %v1139
        %v1153 = vpack.c.b16 %v1142, %v1141
        %v1154 = vpack.c.b16 %v1144, %v1143
        %v1155 = vpack.c.b16 %v1146, %v1145
        %v1156 = vpack.c.b16 %v1148, %v1147
        %v1158 = vsel %vm290, %v1149, 0
        %v1161 = vsel %vm290, %v1150, 0
        %v1164 = vsel %vm290, %v1151, 0
        %v1167 = vsel %vm290, %v1152, 0
        %v1170 = vsel %vm290, %v1153, 0
        %v1173 = vsel %vm290, %v1154, 0
        %v1176 = vsel %vm290, %v1155, 0
        %v1179 = vsel %vm290, %v1156, 0
        %1181 = vmatprep.subr.bf16.mxu0 0
        %1182 = vmatpush1.bf16.msra.mxu0 0
        %1183 = vmatprep.subr.bf16.mxu0 0
        %1184 = vmatpush1.bf16.msra.mxu0 0
        %1185 = vmatprep.subr.bf16.mxu0 0
        %1186 = vmatpush1.bf16.msra.mxu0 0
        %1187 = vmatprep.subr.bf16.mxu0 0
        %1188 = vmatpush1.bf16.msra.mxu0 0
        %1189 = vmatprep.subr.bf16.mxu0 0
        %1190 = vmatpush1.bf16.msra.mxu0 0
        %1191 = vmatprep.subr.bf16.mxu0 0
        %1192 = vmatpush1.bf16.msra.mxu0 0
        %1193 = vmatprep.subr.bf16.mxu0 0
        %1194 = vmatpush1.bf16.msra.mxu0 0
        %1195 = vmatprep.subr.bf16.mxu0 %v323
        %1196 = vmatpush1.bf16.msra.mxu0 %v320
        %1197 = vmatprep.subr.bf16.mxu0 0
        %1198 = vmatpush2.bf16.msra.mxu0 0
        %1199 = vmatprep.subr.bf16.mxu0 0
        %1200 = vmatpush2.bf16.msra.mxu0 0
        %1201 = vmatprep.subr.bf16.mxu0 0
        %1202 = vmatpush2.bf16.msra.mxu0 0
        %1203 = vmatprep.subr.bf16.mxu0 0
        %1204 = vmatpush2.bf16.msra.mxu0 0
        %1205 = vmatprep.subr.bf16.mxu0 0
        %1206 = vmatpush2.bf16.msra.mxu0 0
        %1207 = vmatprep.subr.bf16.mxu0 0
        %1208 = vmatpush2.bf16.msra.mxu0 0
        %1209 = vmatprep.subr.bf16.mxu0 0
        %1210 = vmatpush2.bf16.msra.mxu0 0
        %1211 = vmatprep.subr.bf16.mxu0 0
        %1212 = vmatpush2.bf16.msra.mxu0 0
        %1213 = vmatprep.mubr.bf16.mxu0 0
        %1214 = vmatmul.mubr.bf16.gmra.mxu0 %v1158
        %v1215 = vpop.f32.mrf.mxu0
        %v1216 = vadd.f32 0.0, %v1215
        %v1217 = vpop.f32.mrf.mxu0
        %v1218 = vadd.f32 0.0, %v1217
        %v1219 = vpop.f32.mrf.mxu0
        %v1220 = vadd.f32 0.0, %v1219
        %v1221 = vpop.f32.mrf.mxu0
        %v1222 = vadd.f32 0.0, %v1221
        %1223 = vmatprep.mubr.bf16.mxu0 0
        %1224 = vmatmul.mubr.bf16.gmra.mxu0 %v1161
        %v1225 = vpop.f32.mrf.mxu0
        %v1226 = vadd.f32 0.0, %v1225
        %v1227 = vpop.f32.mrf.mxu0
        %v1228 = vadd.f32 0.0, %v1227
        %v1229 = vpop.f32.mrf.mxu0
        %v1230 = vadd.f32 0.0, %v1229
        %v1231 = vpop.f32.mrf.mxu0
        %v1232 = vadd.f32 0.0, %v1231
        %1233 = vmatprep.mubr.bf16.mxu0 0
        %1234 = vmatmul.mubr.bf16.gmra.mxu0 %v1164
        %v1235 = vpop.f32.mrf.mxu0
        %v1236 = vadd.f32 0.0, %v1235
        %v1237 = vpop.f32.mrf.mxu0
        %v1238 = vadd.f32 0.0, %v1237
        %v1239 = vpop.f32.mrf.mxu0
        %v1240 = vadd.f32 0.0, %v1239
        %v1241 = vpop.f32.mrf.mxu0
        %v1242 = vadd.f32 0.0, %v1241
        %1243 = vmatprep.mubr.bf16.mxu0 0
        %1244 = vmatmul.mubr.bf16.gmra.mxu0 %v1167
        %v1245 = vpop.f32.mrf.mxu0
        %v1246 = vadd.f32 0.0, %v1245
        %v1247 = vpop.f32.mrf.mxu0
        %v1248 = vadd.f32 0.0, %v1247
        %v1249 = vpop.f32.mrf.mxu0
        %v1250 = vadd.f32 0.0, %v1249
        %v1251 = vpop.f32.mrf.mxu0
        %v1252 = vadd.f32 0.0, %v1251
        %1253 = vmatprep.mubr.bf16.mxu0 0
        %1254 = vmatmul.mubr.bf16.gmra.mxu0 %v1170
        %v1255 = vpop.f32.mrf.mxu0
        %v1256 = vadd.f32 0.0, %v1255
        %v1257 = vpop.f32.mrf.mxu0
        %v1258 = vadd.f32 0.0, %v1257
        %v1259 = vpop.f32.mrf.mxu0
        %v1260 = vadd.f32 0.0, %v1259
        %v1261 = vpop.f32.mrf.mxu0
        %v1262 = vadd.f32 0.0, %v1261
        %1263 = vmatprep.mubr.bf16.mxu0 0
        %1264 = vmatmul.mubr.bf16.gmra.mxu0 %v1173
        %v1265 = vpop.f32.mrf.mxu0
        %v1266 = vadd.f32 0.0, %v1265
        %v1267 = vpop.f32.mrf.mxu0
        %v1268 = vadd.f32 0.0, %v1267
        %v1269 = vpop.f32.mrf.mxu0
        %v1270 = vadd.f32 0.0, %v1269
        %v1271 = vpop.f32.mrf.mxu0
        %v1272 = vadd.f32 0.0, %v1271
        %1273 = vmatprep.mubr.bf16.mxu0 0
        %1274 = vmatmul.mubr.bf16.gmra.mxu0 %v1176
        %v1275 = vpop.f32.mrf.mxu0
        %v1276 = vadd.f32 0.0, %v1275
        %v1277 = vpop.f32.mrf.mxu0
        %v1278 = vadd.f32 0.0, %v1277
        %v1279 = vpop.f32.mrf.mxu0
        %v1280 = vadd.f32 0.0, %v1279
        %v1281 = vpop.f32.mrf.mxu0
        %v1282 = vadd.f32 0.0, %v1281
        %1283 = vmatprep.mubr.bf16.mxu0 0
        %1284 = vmatmul.mubr.bf16.gmra.mxu0 %v1179
        %v1285 = vpop.f32.mrf.mxu0
        %v1286 = vadd.f32 0.0, %v1285
        %v1287 = vpop.f32.mrf.mxu0
        %v1288 = vadd.f32 0.0, %v1287
        %v1289 = vpop.f32.mrf.mxu0
        %v1290 = vadd.f32 0.0, %v1289
        %v1291 = vpop.f32.mrf.mxu0
        %v1292 = vadd.f32 0.0, %v1291
        %1293 = vdwg.mxu0
        %v1294 = vmax.f32 %v1216, 0.0
        %v1295 = vmax.f32 %v1218, 0.0
        %v1296 = vmax.f32 %v1220, 0.0
        %v1297 = vmax.f32 %v1222, 0.0
        %v1298 = vmax.f32 %v1226, 0.0
        %v1299 = vmax.f32 %v1228, 0.0
        %v1300 = vmax.f32 %v1230, 0.0
        %v1301 = vmax.f32 %v1232, 0.0
        %v1302 = vmax.f32 %v1236, 0.0
        %v1303 = vmax.f32 %v1238, 0.0
        %v1304 = vmax.f32 %v1240, 0.0
        %v1305 = vmax.f32 %v1242, 0.0
        %v1306 = vmax.f32 %v1246, 0.0
        %v1307 = vmax.f32 %v1248, 0.0
        %v1308 = vmax.f32 %v1250, 0.0
        %v1309 = vmax.f32 %v1252, 0.0
        %v1310 = vmax.f32 %v1256, 0.0
        %v1311 = vmax.f32 %v1258, 0.0
        %v1312 = vmax.f32 %v1260, 0.0
        %v1313 = vmax.f32 %v1262, 0.0
        %v1314 = vmax.f32 %v1266, 0.0
        %v1315 = vmax.f32 %v1268, 0.0
        %v1316 = vmax.f32 %v1270, 0.0
        %v1317 = vmax.f32 %v1272, 0.0
        %v1318 = vmax.f32 %v1276, 0.0
        %v1319 = vmax.f32 %v1278, 0.0
        %v1320 = vmax.f32 %v1280, 0.0
        %v1321 = vmax.f32 %v1282, 0.0
        %v1322 = vmax.f32 %v1286, 0.0
        %v1323 = vmax.f32 %v1288, 0.0
        %v1324 = vmax.f32 %v1290, 0.0
        %v1325 = vmax.f32 %v1292, 0.0
        %v1326 = vpack.c.bf16 %v1296, %v1294
        %v1327 = vpack.c.bf16 %v1297, %v1295
        %v1328 = vpack.c.bf16 %v1300, %v1298
        %v1329 = vpack.c.bf16 %v1301, %v1299
        %v1330 = vpack.c.bf16 %v1304, %v1302
        %v1331 = vpack.c.bf16 %v1305, %v1303
        %v1332 = vpack.c.bf16 %v1308, %v1306
        %v1333 = vpack.c.bf16 %v1309, %v1307
        %v1334 = vpack.c.bf16 %v1312, %v1310
        %v1335 = vpack.c.bf16 %v1313, %v1311
        %v1336 = vpack.c.bf16 %v1316, %v1314
        %v1337 = vpack.c.bf16 %v1317, %v1315
        %v1338 = vpack.c.bf16 %v1320, %v1318
        %v1339 = vpack.c.bf16 %v1321, %v1319
        %v1340 = vpack.c.bf16 %v1324, %v1322
        %v1341 = vpack.c.bf16 %v1325, %v1323
        %s1342 = scalar_lea.vmem %s2, 3
        %v1343 = vld [vmem:[%s1342] sm:$0x1]
        %1344 = vmatprep.subr.bf16.mxu0 %v1341
        %1345 = vmatpush1.bf16.msra.mxu0 %v1340
        %1346 = vmatprep.subr.bf16.mxu0 %v1339
        %1347 = vmatpush1.bf16.msra.mxu0 %v1338
        %1348 = vmatprep.subr.bf16.mxu0 %v1337
        %1349 = vmatpush1.bf16.msra.mxu0 %v1336
        %1350 = vmatprep.subr.bf16.mxu0 %v1335
        %1351 = vmatpush1.bf16.msra.mxu0 %v1334
        %1352 = vmatprep.subr.bf16.mxu0 %v1333
        %1353 = vmatpush1.bf16.msra.mxu0 %v1332
        %1354 = vmatprep.subr.bf16.mxu0 %v1331
        %1355 = vmatpush1.bf16.msra.mxu0 %v1330
        %1356 = vmatprep.subr.bf16.mxu0 %v1329
        %1357 = vmatpush1.bf16.msra.mxu0 %v1328
        %1358 = vmatprep.subr.bf16.mxu0 %v1327
        %1359 = vmatpush1.bf16.msra.mxu0 %v1326
        %1360 = vmatprep.subr.bf16.mxu0 0
        %1361 = vmatpush2.bf16.msra.mxu0 0
        %1362 = vmatprep.subr.bf16.mxu0 0
        %1363 = vmatpush2.bf16.msra.mxu0 0
        %1364 = vmatprep.subr.bf16.mxu0 0
        %1365 = vmatpush2.bf16.msra.mxu0 0
        %1366 = vmatprep.subr.bf16.mxu0 0
        %1367 = vmatpush2.bf16.msra.mxu0 0
        %1368 = vmatprep.subr.bf16.mxu0 0
        %1369 = vmatpush2.bf16.msra.mxu0 0
        %1370 = vmatprep.subr.bf16.mxu0 0
        %1371 = vmatpush2.bf16.msra.mxu0 0
        %1372 = vmatprep.subr.bf16.mxu0 0
        %1373 = vmatpush2.bf16.msra.mxu0 0
        %1374 = vmatprep.subr.bf16.mxu0 0
        %1375 = vmatpush2.bf16.msra.mxu0 0
        %1376 = vmatprep.mubr.bf16.mxu0 0
        %1377 = vmatmul.mubr.bf16.gmra.mxu0 %v1343
        %v1378 = vpop.f32.mrf.mxu0
        %v1379 = vadd.f32 0.0, %v1378
        %v1380 = vpop.f32.mrf.mxu0
        %v1381 = vadd.f32 0.0, %v1380
        %v1382 = vpop.f32.mrf.mxu0
        %v1383 = vpop.f32.mrf.mxu0
        %1384 = vdwg.mxu0
        %v1385 = vadd.f32 %v1098, %v1379
        %v1386 = vadd.f32 %v1099, %v1381
        %v1387 = vstv %s229
        %v1388 = vadd.f32 %v1385, %v1387
        %v1389 = vadd.f32 %v1386, %v1387
        %v1392 = vcombine.low %v1388, %v1389
        %v1394 = vunpack.c.l.s4 1966171168
        %v1395 = vunpack.c.0.s8 %v1394
        %v1396 = vlaneseq
        %v1397 = vshrl.u32 %v1396, 7
        %v1398 = vsub.s32 %v1395, %v1397
        %v1399 = vrot.slane %v1392, %v1398
        %v1401 = vunpack.c.l.s4 1966171168
        %v1402 = vunpack.c.0.s8 %v1401
        %v1403 = vlaneseq
        %v1404 = vshrl.u32 %v1403, 7
        %v1405 = vsub.s32 %v1402, %v1404
        %v1406 = vrot.slane %v1399, %v1405
        %v1408 = vlaneseq
        %vm1409 = vcmp.ge.s32.totalorder %v1408, 0
        %vm1410 = vcmp.lt.s32.totalorder %v1408, 256
        %vm1411 = vmand %vm1409, %vm1410
        %1412 = vst.msk [vmem:[%s216] sm:$0x3] %vm1411, %v1406
        %s1413 = sand.u32 %s132, 1
        %s1414 = scalar_lea.sflag [#allocation4], %s1413
        %s1415 = sand.u32 %s132, 1
        %s1416 = smul.addr %s1415, 2
        %s1417 = scalar_lea.vmem [#allocation3], %s1416
        // Predicated region
        $region37: #{tpu_custom_call.1} parent=35 // pred_check
          %p1418 = pneg %p142
        $region38: #{tpu_custom_call.1} parent=35 // pred_check_branch
          %1420 = sbr.rel (%p1418) target = $region40
        $region39: #{tpu_custom_call.1} parent=35 // pred_region
          %s1421 = smul.u32 2, %s24
          %s1423 = ssub.s32 32, 32
          %1424 = vsyncadd %s1414, %s1423
          %s1425 = smul.addr %s23, 2
          %s1426 = sadd.s32 %s1421, %s1425
          %s1427 = smul.addr %s1426, 16
          %s1428 = scalar_lea.hbm %s4, %s1427
          %s1430 = sshll.u32 %s1417, 4
          %s1431 = int_to_ptr.vmem [resolvable:$true] %s1430
          %1433 = dma.vmem_to_hbm [thread:$0]  %s1431, 32, %s1428, %s1414
        $region40: #{tpu_custom_call.1} parent=35 // pred_fallthru
          _
      $region36: #{tpu_custom_call.1} parent=5 // pred_fallthru
        _
      %p1434 = scmp.le.s32.totalorder 2, %s14
      // Predicated region
      $region41: #{tpu_custom_call.1} parent=5 // pred_check
        %p1435 = pneg %p1434
      $region42: #{tpu_custom_call.1} parent=5 // pred_check_branch
        %1437 = sbr.rel (%p1435) target = $region44
      $region43: #{tpu_custom_call.1} parent=5 // pred_region
        %s1438 = ssub.s32 %s14, 2
        // Predicated region
        $region45: #{tpu_custom_call.1} parent=43 // pred_check
          %p1439 = pneg %p148
        $region46: #{tpu_custom_call.1} parent=43 // pred_check_branch
          %1441 = sbr.rel (%p1439) target = $region48
        $region47: #{tpu_custom_call.1} parent=43 // pred_region
          %s1442 = sand.u32 %s133, 1
          %s1443 = scalar_lea.sflag [#allocation4], %s1442
          %s1444 = sand.u32 %s133, 1
          %s1445 = smul.addr %s1444, 2
          %s1446 = scalar_lea.vmem [#allocation3], %s1445
          %1447 = dma.done %s1443, 32
        $region48: #{tpu_custom_call.1} parent=43 // pred_fallthru
          _
      $region44: #{tpu_custom_call.1} parent=5 // pred_fallthru
        _
    $region6: #{tpu_custom_call.1} parent=1 // loop_footer
      %s18 = sadd.s32 1, %s14
    $region7: #{tpu_custom_call.1} parent=1 // loop_footer_branch
      %13 = sbr.rel target = $region3
    $region8: #{tpu_custom_call.1} parent=1 // loop_exit
      _
    %1448 = vsyncpa [#allocation4], 1
    %s1449 = scalar_lea.sflag [#allocation4], 1
    %1450 = vsyncpa %s1449, 1

</llo_original>
